<compile_context>
chip_gen: v5e
topology: v5e:2x2
jax: 0.10.0
libtpu: 0.0.40
codegen_flags: <defaults>
</compile_context>

<pallas_src>
import numpy as np
import jax
import jax.numpy as jnp
from jax import lax
from jax.experimental import pallas as pl
from jax.experimental.pallas import tpu as pltpu


# ----------------------------------------------------------------------------
# Deterministic MTF filter generation (synthetic, no file I/O).
# TODO(synk): the original gen_mtf uses a Kaiser-windowed fwind1 FIR design; a
#             deterministic separable Gaussian approximation (per-band Nyquist
#             gain, normalized) is used here.
# ----------------------------------------------------------------------------
def gen_mtf_taps(ratio, sensor, ksize=7):
    if sensor == 'S2-20':
        gnyq = np.array([0.365, 0.33, 0.34, 0.32, 0.33, 0.24])
    else:  # 'S2-60' and 'S2-60_bis'
        gnyq = np.array([0.3175, 0.295, 0.30])
    fcut = 1.0 / float(ratio)
    coords = np.arange(ksize, dtype=np.float64) - (ksize - 1) / 2.0
    taps = []
    for g in gnyq:
        alpha = np.sqrt((ksize * fcut / 2.0) ** 2 / (-2.0 * np.log(g)))
        sigma = ksize / (2.0 * np.pi * alpha)          # spatial-domain sigma
        t = np.exp(-coords ** 2 / (2.0 * sigma ** 2))
        t = t / t.sum()
        taps.append(t)
    # (nbands, K) 1-D taps; outer(t, t) reproduces the normalized 2-D kernel.
    return np.stack(taps, axis=0)


def _build_downgrade_matrices(taps, H, W, ratio):
    """Banded matrices implementing (depthwise 'same' conv) + [3::ratio] subsample.

    downgraded[c] = Vmat[c] @ (x[c] @ Hmat[c])   with zero 'same' padding folded
    into the band structure (out-of-range taps simply get zero weight).
    """
    C, K = taps.shape
    pad = (K - 1) // 2
    rows = np.arange(3, H, ratio)
    cols = np.arange(3, W, ratio)
    Hs, Ws = len(rows), len(cols)
    hmat = np.zeros((C, W, Ws), np.float32)   # (H,W) @ (W,Ws) -> (H,Ws)
    vmat = np.zeros((C, Hs, H), np.float32)   # (Hs,H) @ (H,Ws) -> (Hs,Ws)
    for c in range(C):
        for j, cj in enumerate(cols):
            for k in range(K):
                w = cj + k - pad              # F.conv2d = cross-correlation
                if 0 <= w < W:
                    hmat[c, w, j] += taps[c, k]
        for i, ri in enumerate(rows):
            for k in range(K):
                h = ri + k - pad
                if 0 <= h < H:
                    vmat[c, i, h] += taps[c, k]
    return jnp.asarray(hmat), jnp.asarray(vmat), Hs, Ws


# ----------------------------------------------------------------------------
# Fused Pallas kernel: one (batch, channel) plane per grid step.
#   MXU: x @ Hmat (horizontal taps + column subsample), Vmat @ t (vertical taps
#        + row subsample).  VPU/XLU: squared-error and label partial sums.
# ----------------------------------------------------------------------------
def _ergas_fused_kernel(x_ref, y_ref, hmat_ref, vmat_ref, err_ref, lab_ref):
    x = x_ref[0, 0].astype(jnp.float32)        # (H, W)   raw output plane
    y = y_ref[0, 0].astype(jnp.float32)        # (Hs, Ws) label plane
    hm = hmat_ref[0]                           # (W, Ws)
    vm = vmat_ref[0]                           # (Hs, H)

    t = jnp.dot(x, hm, preferred_element_type=jnp.float32)    # (H, Ws)
    dg = jnp.dot(vm, t, preferred_element_type=jnp.float32)   # (Hs, Ws)

    d = dg - y
    ones = jnp.ones(err_ref.shape, jnp.float32)                # lane-dense block
    err_ref[...] = ones * jnp.sum(d * d)
    lab_ref[...] = ones * jnp.sum(y)


def repro_ergas_pallas(outputs, labels, taps, ratio):
    B, C, H, W = outputs.shape
    Bl, Cl, Hs, Ws = labels.shape
    assert (B, C) == (Bl, Cl)
    hmat, vmat, Hs2, Ws2 = _build_downgrade_matrices(np.asarray(taps), H, W, ratio)
    assert (Hs, Ws) == (Hs2, Ws2), "labels must match the downgraded resolution"

    err, lab = pl.pallas_call(
        _ergas_fused_kernel,
        out_shape=(jax.ShapeDtypeStruct((B, C, 1, 128), jnp.float32),
                   jax.ShapeDtypeStruct((B, C, 1, 128), jnp.float32)),
        grid=(B, C),
        in_specs=[
            pl.BlockSpec((1, 1, H, W), lambda b, c: (b, c, 0, 0)),
            pl.BlockSpec((1, 1, Hs, Ws), lambda b, c: (b, c, 0, 0)),
            pl.BlockSpec((1, W, Ws), lambda b, c: (c, 0, 0)),
            pl.BlockSpec((1, Hs, H), lambda b, c: (c, 0, 0)),
        ],
        out_specs=(
            pl.BlockSpec((1, 1, 1, 128), lambda b, c: (b, c, 0, 0)),
            pl.BlockSpec((1, 1, 1, 128), lambda b, c: (b, c, 0, 0)),
        ),
        compiler_params=pltpu.CompilerParams(
            dimension_semantics=("parallel", "parallel"),
            vmem_limit_bytes=64 * 1024 * 1024),
    )(outputs, labels, hmat, vmat)

    npix = float(Hs * Ws)
    err_mean = err[:, :, 0, 0] / npix          # per-(b,c) MSE
    mu = lab[:, :, 0, 0] / npix                # per-(b,c) label mean
    # TODO(synk): mt.ERGAS source not provided; implemented as the standard
    #             ERGAS with 'mean' reduction over the batch.
    ergas_idx = (100.0 / float(ratio)) * jnp.sqrt(
        jnp.mean(err_mean / (mu * mu), axis=1))
    return jnp.mean(ergas_idx)


# ----------------------------------------------------------------------------
# ReproErgas module (JAX / Pallas)
# ----------------------------------------------------------------------------
class ReproErgasJax:
    def __init__(self, ratio, lana=False, ksize=7):
        self.ratio = int(ratio)
        if ratio == 2:
            sensor = 'S2-20'
        elif ratio == 6:
            sensor = 'S2-60'
        else:
            sensor = 'S2-60'
        if lana and ratio == 6:
            sensor = 'S2-60_bis'
        self.sensor = sensor
        self.taps = gen_mtf_taps(self.ratio, sensor, ksize)        # (nbands, K)
        # Full 2-D depthwise kernel (outer product of the 1-D taps), used only
        # by the pure-JAX reference below (equivalent to mtf_kernel_to_torch).
        self.kernel2d = jnp.asarray(
            np.einsum('ck,cl->ckl', self.taps, self.taps), dtype=jnp.float32)

    def __call__(self, outputs, labels):
        return repro_ergas_pallas(outputs, labels, self.taps, self.ratio)


# ----------------------------------------------------------------------------
# Pure-JAX reference (lax conv + plain ERGAS) for validation
# ----------------------------------------------------------------------------
def reference(outputs, labels, kernel2d, ratio):
    B, C, H, W = outputs.shape
    K = kernel2d.shape[-1]
    pad = (K - 1) // 2
    conv = lax.conv_general_dilated(
        outputs, kernel2d[:, None, :, :], (1, 1), [(pad, pad), (pad, pad)],
        dimension_numbers=('NCHW', 'OIHW', 'NCHW'), feature_group_count=C,
        precision=lax.Precision.HIGHEST)
    dg = conv[:, :, 3::ratio, 3::ratio].astype(jnp.float32)
    y = labels.astype(jnp.float32)
    mu = jnp.mean(y, axis=(2, 3))
    err = jnp.mean((dg - y) ** 2, axis=(2, 3))
    ergas_idx = (100.0 / float(ratio)) * jnp.sqrt(jnp.mean(err / (mu ** 2), axis=1))
    return jnp.mean(ergas_idx)


if __name__ == "__main__":
    key = jax.random.PRNGKey(0)
    ratio = 2                      # -> sensor 'S2-20', 6 bands
    B, C, H, W = 2, 6, 32, 32
    k1, k2 = jax.random.split(key)
    outputs = jax.random.uniform(k1, (B, C, H, W), dtype=jnp.float32)

    # labels are the low-resolution reference: same spatial size as the
    # downgraded outputs ([3::ratio] of H/W -> 15x15 here).
    Hs = len(range(3, H, ratio))
    Ws = len(range(3, W, ratio))
    labels = 0.25 + 0.5 * jax.random.uniform(k2, (B, C, Hs, Ws), dtype=jnp.float32)

    model = ReproErgasJax(ratio=ratio, ksize=7)
    q = jax.block_until_ready(model(outputs, labels))

    ref = jax.block_until_ready(reference(outputs, labels, model.kernel2d, ratio))
    assert np.isfinite(float(q)), q
    assert np.allclose(np.asarray(q), np.asarray(ref), rtol=1e-3, atol=1e-4), (q, ref)

    print("KERNEL_OK")
</pallas_src>

<mosaic_0001>
module attributes {stable_mosaic.version = 11 : i64} {
  func.func @_ergas_fused_kernel(%arg0: i32, %arg1: i32, %arg2: memref<1x1x32x32xf32, #tpu.memory_space<vmem>>, %arg3: memref<1x1x15x15xf32, #tpu.memory_space<vmem>>, %arg4: memref<1x32x15xf32, #tpu.memory_space<vmem>>, %arg5: memref<1x15x32xf32, #tpu.memory_space<vmem>>, %arg6: memref<1x1x1x128xf32, #tpu.memory_space<vmem>>, %arg7: memref<1x1x1x128xf32, #tpu.memory_space<vmem>>) attributes {dimension_semantics = [#tpu.dimension_semantics<parallel>, #tpu.dimension_semantics<parallel>], iteration_bounds = array<i64: 2, 6>, scalar_prefetch = 0 : i64, scratch_operands = 0 : i64, tpu.core_type = #tpu.core_type<tc>, window_params = [{transform_indices = @transform_0, window_bounds = array<i64: 1, 1, 32, 32>}, {transform_indices = @transform_1, window_bounds = array<i64: 1, 1, 15, 15>}, {transform_indices = @transform_2, window_bounds = array<i64: 1, 32, 15>}, {transform_indices = @transform_3, window_bounds = array<i64: 1, 15, 32>}, {transform_indices = @transform_4, window_bounds = array<i64: 1, 1, 1, 128>}, {transform_indices = @transform_5, window_bounds = array<i64: 1, 1, 1, 128>}]} {
    %c0 = arith.constant 0 : index
    %c0_0 = arith.constant 0 : index
    %c0_1 = arith.constant 0 : index
    %c0_2 = arith.constant 0 : index
    %0 = vector.load %arg2[%c0, %c0_0, %c0_1, %c0_2] : memref<1x1x32x32xf32, #tpu.memory_space<vmem>>, vector<1x1x32x32xf32>
    %1 = vector.shape_cast %0 : vector<1x1x32x32xf32> to vector<32x32xf32>
    %c0_3 = arith.constant 0 : index
    %c0_4 = arith.constant 0 : index
    %c0_5 = arith.constant 0 : index
    %c0_6 = arith.constant 0 : index
    %2 = vector.load %arg3[%c0_3, %c0_4, %c0_5, %c0_6] : memref<1x1x15x15xf32, #tpu.memory_space<vmem>>, vector<1x1x15x15xf32>
    %3 = vector.shape_cast %2 : vector<1x1x15x15xf32> to vector<15x15xf32>
    %c0_7 = arith.constant 0 : index
    %c0_8 = arith.constant 0 : index
    %c0_9 = arith.constant 0 : index
    %4 = vector.load %arg4[%c0_7, %c0_8, %c0_9] : memref<1x32x15xf32, #tpu.memory_space<vmem>>, vector<1x32x15xf32>
    %5 = vector.shape_cast %4 : vector<1x32x15xf32> to vector<32x15xf32>
    %c0_10 = arith.constant 0 : index
    %c0_11 = arith.constant 0 : index
    %c0_12 = arith.constant 0 : index
    %6 = vector.load %arg5[%c0_10, %c0_11, %c0_12] : memref<1x15x32xf32, #tpu.memory_space<vmem>>, vector<1x15x32xf32>
    %7 = vector.shape_cast %6 : vector<1x15x32xf32> to vector<15x32xf32>
    %cst = arith.constant dense<0.000000e+00> : vector<32x15xf32>
    %8 = tpu.matmul %1, %5, %cst {dimension_numbers = #tpu.dot_dimension_numbers<[1], [0], [0], [1], [0, 0, 1, 1], [], []>} : vector<32x32xf32>, vector<32x15xf32>, vector<32x15xf32> -> vector<32x15xf32>
    %cst_13 = arith.constant dense<0.000000e+00> : vector<15x15xf32>
    %9 = tpu.matmul %7, %8, %cst_13 {dimension_numbers = #tpu.dot_dimension_numbers<[1], [0], [0], [1], [0, 0, 1, 1], [], []>} : vector<15x32xf32>, vector<32x15xf32>, vector<15x15xf32> -> vector<15x15xf32>
    %10 = arith.subf %9, %3 : vector<15x15xf32>
    %cst_14 = arith.constant 1.000000e+00 : f32
    %11 = vector.broadcast %cst_14 : f32 to vector<1x1x1x128xf32>
    %12 = arith.mulf %10, %10 : vector<15x15xf32>
    %13 = vector.shape_cast %12 : vector<15x15xf32> to vector<1x15x15xf32>
    %cst_15 = arith.constant dense<0.000000e+00> : vector<1xf32>
    %14 = vector.multi_reduction <add>, %13, %cst_15 [1, 2] : vector<1x15x15xf32> to vector<1xf32>
    %15 = vector.shape_cast %14 : vector<1xf32> to vector<1x1x1xf32>
    %16 = vector.extract %15[0, 0, 0] : f32 from vector<1x1x1xf32>
    %17 = vector.broadcast %16 : f32 to vector<1x1x1x128xf32>
    %18 = arith.mulf %11, %17 : vector<1x1x1x128xf32>
    %c0_16 = arith.constant 0 : index
    %c0_17 = arith.constant 0 : index
    %c0_18 = arith.constant 0 : index
    %c0_19 = arith.constant 0 : index
    %19 = vector.load %arg6[%c0_16, %c0_17, %c0_18, %c0_19] : memref<1x1x1x128xf32, #tpu.memory_space<vmem>>, vector<1x1x1x128xf32>
    tpu.vector_store %arg6[%c0_16, %c0_17, %c0_18, %c0_19], %18 {strides = array<i32>} : memref<1x1x1x128xf32, #tpu.memory_space<vmem>>, vector<1x1x1x128xf32>,
    %20 = vector.shape_cast %3 : vector<15x15xf32> to vector<1x15x15xf32>
    %cst_20 = arith.constant dense<0.000000e+00> : vector<1xf32>
    %21 = vector.multi_reduction <add>, %20, %cst_20 [1, 2] : vector<1x15x15xf32> to vector<1xf32>
    %22 = vector.shape_cast %21 : vector<1xf32> to vector<1x1x1xf32>
    %23 = vector.extract %22[0, 0, 0] : f32 from vector<1x1x1xf32>
    %24 = vector.broadcast %23 : f32 to vector<1x1x1x128xf32>
    %25 = arith.mulf %11, %24 : vector<1x1x1x128xf32>
    %c0_21 = arith.constant 0 : index
    %c0_22 = arith.constant 0 : index
    %c0_23 = arith.constant 0 : index
    %c0_24 = arith.constant 0 : index
    %26 = vector.load %arg7[%c0_21, %c0_22, %c0_23, %c0_24] : memref<1x1x1x128xf32, #tpu.memory_space<vmem>>, vector<1x1x1x128xf32>
    tpu.vector_store %arg7[%c0_21, %c0_22, %c0_23, %c0_24], %25 {strides = array<i32>} : memref<1x1x1x128xf32, #tpu.memory_space<vmem>>, vector<1x1x1x128xf32>,
    return
  }
  func.func @transform_0(%arg0: i32, %arg1: i32) -> (i32, i32, i32, i32) {
    %c0_i32 = arith.constant 0 : i32
    %c0_i32_0 = arith.constant 0 : i32
    %c0_i32_1 = arith.constant 0 : i32
    return %arg0, %arg1, %c0_i32, %c0_i32_0 : i32, i32, i32, i32
  }
  func.func @transform_1(%arg0: i32, %arg1: i32) -> (i32, i32, i32, i32) {
    %c0_i32 = arith.constant 0 : i32
    %c0_i32_0 = arith.constant 0 : i32
    %c0_i32_1 = arith.constant 0 : i32
    return %arg0, %arg1, %c0_i32, %c0_i32_0 : i32, i32, i32, i32
  }
  func.func @transform_2(%arg0: i32, %arg1: i32) -> (i32, i32, i32) {
    %c0_i32 = arith.constant 0 : i32
    %c0_i32_0 = arith.constant 0 : i32
    %c0_i32_1 = arith.constant 0 : i32
    return %arg1, %c0_i32, %c0_i32_0 : i32, i32, i32
  }
  func.func @transform_3(%arg0: i32, %arg1: i32) -> (i32, i32, i32) {
    %c0_i32 = arith.constant 0 : i32
    %c0_i32_0 = arith.constant 0 : i32
    %c0_i32_1 = arith.constant 0 : i32
    return %arg1, %c0_i32, %c0_i32_0 : i32, i32, i32
  }
  func.func @transform_4(%arg0: i32, %arg1: i32) -> (i32, i32, i32, i32) {
    %c0_i32 = arith.constant 0 : i32
    %c0_i32_0 = arith.constant 0 : i32
    %c0_i32_1 = arith.constant 0 : i32
    return %arg0, %arg1, %c0_i32, %c0_i32_0 : i32, i32, i32, i32
  }
  func.func @transform_5(%arg0: i32, %arg1: i32) -> (i32, i32, i32, i32) {
    %c0_i32 = arith.constant 0 : i32
    %c0_i32_0 = arith.constant 0 : i32
    %c0_i32_1 = arith.constant 0 : i32
    return %arg0, %arg1, %c0_i32, %c0_i32_0 : i32, i32, i32, i32
  }
}

</mosaic_0001>

<llo_original>
// kernel: tpu_custom_call.1
$region0: #{tpu_custom_call.1}
  #allocation0 [shape = 'u32[]', space=smem, size = 0x4, offset = 0x4, fixed_abs, tag = 'smem constant byte address 0x4 - core index']
  #allocation1 [shape = 'u32[72,128]{1,0:T(1,128)}', space=vmem, size = 0x9000, scoped, tag = 'internal scratch']
  %s0 = inlined_call_operand.vmem [shape: f32[2,6,32,32], index: 0, kind: input, shape index: {}]
  %s1 = inlined_call_operand.vmem [shape: f32[2,6,15,15], index: 1, kind: input, shape index: {}]
  %s2 = inlined_call_operand.vmem [shape: f32[6,32,15], index: 2, kind: input, shape index: {}]
  %s3 = inlined_call_operand.vmem [shape: f32[6,15,32], index: 3, kind: input, shape index: {}]
  %s4 = inlined_call_operand.hbm [shape: f32[2,6,1,128], index: 4, kind: output, shape index: {0}]
  %s5 = inlined_call_operand.hbm [shape: f32[2,6,1,128], index: 5, kind: output, shape index: {1}]
  %6 = xla_tuple %s4, %s5
  %s7 = sld [smem:[#allocation0]]
  $region57: #{tpu_custom_call.1} parent=0
    _
  %s9 = ssub.s32 1, %s7
  %s10 = scalar_select 0, %s9, %s7
  $region1: #{tpu_custom_call.1} parent=0
    #allocation2 [shape = 'u8[1024]{0}', space=vmem, size = 0x400, scoped, tag = 'output window, operand 0']
    #allocation3 [shape = 's32[2]{0}', space=sflag, size = 0x8, scoped, tag = 'scoped memory for tpu_custom_call.1']
    #allocation4 [shape = 'u8[1024]{0}', space=vmem, size = 0x400, scoped, tag = 'output window, operand 1']
    #allocation5 [shape = 's32[2]{0}', space=sflag, size = 0x8, scoped, tag = 'scoped memory for tpu_custom_call.1']
    %11 = vsyncpa [#allocation3], 0
    %s12 = scalar_lea.sflag [#allocation3], 1
    %13 = vsyncpa %s12, 0
    %14 = vsyncpa [#allocation5], 0
    %s15 = scalar_lea.sflag [#allocation5], 1
    %16 = vsyncpa %s15, 0
    loop: start=0, step=1, limit=14
    $region2: #{tpu_custom_call.1} parent=1 // loop_pre_header
      _
    $region3: #{tpu_custom_call.1} parent=1 // loop_header
      %s18 = sphi 0, %s22
      %p19 = scmp.ge.s32.totalorder %s18, 14
      %s25 = sphi 0, %s37
      %s26 = sphi 0, %s33
      %s27 = sphi 0, %s25
      %s28 = sphi 0, %s26
      %s29 = sphi 0, %s27
      %s30 = sphi 0, %s28
      %s42 = sphi 0, %s44
      %s45 = sphi 0, %s42
      %s46 = sphi 0, %s45
      %s62 = sphi 0, %s46
      %s70 = sphi 0, %s72
      %s73 = sphi 0, %s70
      %s74 = sphi 0, %s73
      %s90 = sphi 0, %s74
      %s96 = sphi 0, %s98
      %s99 = sphi 0, %s96
      %s100 = sphi 0, %s99
      %s116 = sphi 0, %s100
      %s122 = sphi 0, %s124
      %s125 = sphi 0, %s122
      %s126 = sphi 0, %s125
      %s142 = sphi 0, %s126
      %s150 = sphi 0, %s152
      %s153 = sphi 0, %s150
      %s154 = sphi 0, %s153
      %s170 = sphi 0, %s154
      %s178 = sphi 0, %s180
      %s181 = sphi 0, %s178
      %s182 = sphi 0, %s181
      %s198 = sphi 0, %s182
    $region4: #{tpu_custom_call.1} parent=1 // loop_header_branch
      %21 = sbr.rel (%p19) target = $region8
    $region5: #{tpu_custom_call.1} parent=1 // loop_body
      %s23 = ssub.s32 %s18, 1
      %s24 = ssub.s32 %s18, 2
      %s31 = sadd.s32 1, %s26
      %p32 = scmp.ge.s32.totalorder %s31, 6
      %s33 = scalar_select %p32, 0, %s31
      %s34 = sadd.s32 1, %s25
      %s35 = scalar_select %p32, %s34, %s25
      %p36 = scmp.ge.s32.totalorder %s35, 2
      %s37 = scalar_select %p36, 0, %s35
      %s38 = ssub.s32 %s25, %s37
      %s39 = ssub.s32 %s26, %s33
      %s40 = sor.u32 %s38, %s39
      %p41 = scmp.eq.s32.totalorder %s40, 0
      %s43 = sadd.s32 %s42, 1
      %s44 = scalar_select %p41, %s42, %s43
      %p47 = pneg %p41
      %p48 = scmp.eq.s32.totalorder %s18, 11
      %p49 = por %p47, %p48
      %p50 = scmp.ne.s32.totalorder %s42, %s45
      %p51 = scmp.eq.s32.totalorder %s18, 0
      %p52 = por %p50, %p51
      %p53 = scmp.ne.s32.totalorder %s42, %s45
      %p54 = scmp.eq.s32.totalorder %s23, 11
      %p55 = por %p53, %p54
      %p56 = scmp.ne.s32.totalorder %s45, %s46
      %p57 = scmp.eq.s32.totalorder %s23, 0
      %p58 = por %p56, %p57
      %p59 = scmp.ne.s32.totalorder %s45, %s46
      %p60 = scmp.eq.s32.totalorder %s24, 11
      %p61 = por %p59, %p60
      %p63 = scmp.ne.s32.totalorder %s46, %s62
      %p64 = scmp.eq.s32.totalorder %s24, 0
      %p65 = por %p63, %p64
      %s66 = ssub.s32 %s25, %s37
      %s67 = ssub.s32 %s26, %s33
      %s68 = sor.u32 %s66, %s67
      %p69 = scmp.eq.s32.totalorder %s68, 0
      %s71 = sadd.s32 %s70, 1
      %s72 = scalar_select %p69, %s70, %s71
      %p75 = pneg %p69
      %p76 = scmp.eq.s32.totalorder %s18, 11
      %p77 = por %p75, %p76
      %p78 = scmp.ne.s32.totalorder %s70, %s73
      %p79 = scmp.eq.s32.totalorder %s18, 0
      %p80 = por %p78, %p79
      %p81 = scmp.ne.s32.totalorder %s70, %s73
      %p82 = scmp.eq.s32.totalorder %s23, 11
      %p83 = por %p81, %p82
      %p84 = scmp.ne.s32.totalorder %s73, %s74
      %p85 = scmp.eq.s32.totalorder %s23, 0
      %p86 = por %p84, %p85
      %p87 = scmp.ne.s32.totalorder %s73, %s74
      %p88 = scmp.eq.s32.totalorder %s24, 11
      %p89 = por %p87, %p88
      %p91 = scmp.ne.s32.totalorder %s74, %s90
      %p92 = scmp.eq.s32.totalorder %s24, 0
      %p93 = por %p91, %p92
      %s94 = ssub.s32 %s26, %s33
      %p95 = scmp.eq.s32.totalorder %s94, 0
      %s97 = sadd.s32 %s96, 1
      %s98 = scalar_select %p95, %s96, %s97
      %p101 = pneg %p95
      %p102 = scmp.eq.s32.totalorder %s18, 11
      %p103 = por %p101, %p102
      %p104 = scmp.ne.s32.totalorder %s96, %s99
      %p105 = scmp.eq.s32.totalorder %s18, 0
      %p106 = por %p104, %p105
      %p107 = scmp.ne.s32.totalorder %s96, %s99
      %p108 = scmp.eq.s32.totalorder %s23, 11
      %p109 = por %p107, %p108
      %p110 = scmp.ne.s32.totalorder %s99, %s100
      %p111 = scmp.eq.s32.totalorder %s23, 0
      %p112 = por %p110, %p111
      %p113 = scmp.ne.s32.totalorder %s99, %s100
      %p114 = scmp.eq.s32.totalorder %s24, 11
      %p115 = por %p113, %p114
      %p117 = scmp.ne.s32.totalorder %s100, %s116
      %p118 = scmp.eq.s32.totalorder %s24, 0
      %p119 = por %p117, %p118
      %s120 = ssub.s32 %s26, %s33
      %p121 = scmp.eq.s32.totalorder %s120, 0
      %s123 = sadd.s32 %s122, 1
      %s124 = scalar_select %p121, %s122, %s123
      %p127 = pneg %p121
      %p128 = scmp.eq.s32.totalorder %s18, 11
      %p129 = por %p127, %p128
      %p130 = scmp.ne.s32.totalorder %s122, %s125
      %p131 = scmp.eq.s32.totalorder %s18, 0
      %p132 = por %p130, %p131
      %p133 = scmp.ne.s32.totalorder %s122, %s125
      %p134 = scmp.eq.s32.totalorder %s23, 11
      %p135 = por %p133, %p134
      %p136 = scmp.ne.s32.totalorder %s125, %s126
      %p137 = scmp.eq.s32.totalorder %s23, 0
      %p138 = por %p136, %p137
      %p139 = scmp.ne.s32.totalorder %s125, %s126
      %p140 = scmp.eq.s32.totalorder %s24, 11
      %p141 = por %p139, %p140
      %p143 = scmp.ne.s32.totalorder %s126, %s142
      %p144 = scmp.eq.s32.totalorder %s24, 0
      %p145 = por %p143, %p144
      %s146 = ssub.s32 %s25, %s37
      %s147 = ssub.s32 %s26, %s33
      %s148 = sor.u32 %s146, %s147
      %p149 = scmp.eq.s32.totalorder %s148, 0
      %s151 = sadd.s32 %s150, 1
      %s152 = scalar_select %p149, %s150, %s151
      %p155 = pneg %p149
      %p156 = scmp.eq.s32.totalorder %s18, 11
      %p157 = por %p155, %p156
      %p158 = scmp.ne.s32.totalorder %s150, %s153
      %p159 = scmp.eq.s32.totalorder %s18, 0
      %p160 = por %p158, %p159
      %p161 = scmp.ne.s32.totalorder %s150, %s153
      %p162 = scmp.eq.s32.totalorder %s23, 11
      %p163 = por %p161, %p162
      %p164 = scmp.ne.s32.totalorder %s153, %s154
      %p165 = scmp.eq.s32.totalorder %s23, 0
      %p166 = por %p164, %p165
      %p167 = scmp.ne.s32.totalorder %s153, %s154
      %p168 = scmp.eq.s32.totalorder %s24, 11
      %p169 = por %p167, %p168
      %p171 = scmp.ne.s32.totalorder %s154, %s170
      %p172 = scmp.eq.s32.totalorder %s24, 0
      %p173 = por %p171, %p172
      %s174 = ssub.s32 %s25, %s37
      %s175 = ssub.s32 %s26, %s33
      %s176 = sor.u32 %s174, %s175
      %p177 = scmp.eq.s32.totalorder %s176, 0
      %s179 = sadd.s32 %s178, 1
      %s180 = scalar_select %p177, %s178, %s179
      %p183 = pneg %p177
      %p184 = scmp.eq.s32.totalorder %s18, 11
      %p185 = por %p183, %p184
      %p186 = scmp.ne.s32.totalorder %s178, %s181
      %p187 = scmp.eq.s32.totalorder %s18, 0
      %p188 = por %p186, %p187
      %p189 = scmp.ne.s32.totalorder %s178, %s181
      %p190 = scmp.eq.s32.totalorder %s23, 11
      %p191 = por %p189, %p190
      %p192 = scmp.ne.s32.totalorder %s181, %s182
      %p193 = scmp.eq.s32.totalorder %s23, 0
      %p194 = por %p192, %p193
      %p195 = scmp.ne.s32.totalorder %s181, %s182
      %p196 = scmp.eq.s32.totalorder %s24, 11
      %p197 = por %p195, %p196
      %p199 = scmp.ne.s32.totalorder %s182, %s198
      %p200 = scmp.eq.s32.totalorder %s24, 0
      %p201 = por %p199, %p200
      %p202 = scmp.le.s32.totalorder 1, %s18
      %p203 = scmp.lt.s32.totalorder %s18, 13
      %p204 = pnand %p202, %p203
      %p205 = pneg %p204
      // Predicated region
      $region9: #{tpu_custom_call.1} parent=5 // pred_check
        _
      $region10: #{tpu_custom_call.1} parent=5 // pred_check_branch
        %207 = sbr.rel (%p204) target = $region12
      $region11: #{tpu_custom_call.1} parent=5 // pred_region
        %s208 = ssub.s32 %s18, 1
      $region12: #{tpu_custom_call.1} parent=5 // pred_fallthru
        _
      %p209 = scmp.lt.s32.totalorder %s18, 12
      // Predicated region
      $region13: #{tpu_custom_call.1} parent=5 // pred_check
        %p210 = pneg %p209
      $region14: #{tpu_custom_call.1} parent=5 // pred_check_branch
        %212 = sbr.rel (%p210) target = $region16
      $region15: #{tpu_custom_call.1} parent=5 // pred_region
        // Predicated region
        $region17: #{tpu_custom_call.1} parent=15 // pred_check
          %p213 = pneg %p52
        $region18: #{tpu_custom_call.1} parent=15 // pred_check_branch
          %215 = sbr.rel (%p213) target = $region20
        $region19: #{tpu_custom_call.1} parent=15 // pred_region
          %p216 = scmp.lt.s32.totalorder %s25, 1
          %s217 = scalar_select %p216, %s25, 1
          %p218 = scmp.lt.s32.totalorder %s26, 5
          %s219 = scalar_select %p218, %s26, 5
          %s220 = smul.addr %s219, 4
          %s221 = smul.addr %s217, 24
          %s222 = sadd.s32 %s220, %s221
          %s223 = smul.addr %s222, 8
          %s224 = scalar_lea.vmem %s0, %s223
        $region20: #{tpu_custom_call.1} parent=15 // pred_fallthru
          _
        // Predicated region
        $region21: #{tpu_custom_call.1} parent=15 // pred_check
          %p225 = pneg %p80
        $region22: #{tpu_custom_call.1} parent=15 // pred_check_branch
          %227 = sbr.rel (%p225) target = $region24
        $region23: #{tpu_custom_call.1} parent=15 // pred_region
          %p228 = scmp.lt.s32.totalorder %s25, 1
          %s229 = scalar_select %p228, %s25, 1
          %p230 = scmp.lt.s32.totalorder %s26, 5
          %s231 = scalar_select %p230, %s26, 5
          %s232 = smul.addr %s231, 2
          %s233 = smul.addr %s229, 12
          %s234 = sadd.s32 %s232, %s233
          %s235 = smul.addr %s234, 8
          %s236 = scalar_lea.vmem %s1, %s235
        $region24: #{tpu_custom_call.1} parent=15 // pred_fallthru
          _
        // Predicated region
        $region25: #{tpu_custom_call.1} parent=15 // pred_check
          %p237 = pneg %p106
        $region26: #{tpu_custom_call.1} parent=15 // pred_check_branch
          %239 = sbr.rel (%p237) target = $region28
        $region27: #{tpu_custom_call.1} parent=15 // pred_region
          %p240 = scmp.lt.s32.totalorder %s26, 5
          %s241 = scalar_select %p240, %s26, 5
          %s242 = smul.addr %s241, 4
          %s243 = smul.addr %s242, 8
          %s244 = scalar_lea.vmem %s2, %s243
        $region28: #{tpu_custom_call.1} parent=15 // pred_fallthru
          _
        // Predicated region
        $region29: #{tpu_custom_call.1} parent=15 // pred_check
          %p245 = pneg %p132
        $region30: #{tpu_custom_call.1} parent=15 // pred_check_branch
          %247 = sbr.rel (%p245) target = $region32
        $region31: #{tpu_custom_call.1} parent=15 // pred_region
          %p248 = scmp.lt.s32.totalorder %s26, 5
          %s249 = scalar_select %p248, %s26, 5
          %s250 = smul.addr %s249, 2
          %s251 = smul.addr %s250, 8
          %s252 = scalar_lea.vmem %s3, %s251
        $region32: #{tpu_custom_call.1} parent=15 // pred_fallthru
          _
      $region16: #{tpu_custom_call.1} parent=5 // pred_fallthru
        _
      %p253 = scmp.le.s32.totalorder 1, %s18
      %p254 = scmp.lt.s32.totalorder %s18, 13
      %p255 = pnand %p253, %p254
      %p256 = pneg %p255
      // Predicated region
      $region33: #{tpu_custom_call.1} parent=5 // pred_check
        _
      $region34: #{tpu_custom_call.1} parent=5 // pred_check_branch
        %258 = sbr.rel (%p255) target = $region36
      $region35: #{tpu_custom_call.1} parent=5 // pred_region
        %s259 = ssub.s32 %s18, 1
        %p260 = scmp.lt.s32.totalorder %s27, 1
        %s261 = scalar_select %p260, %s27, 1
        %p262 = scmp.lt.s32.totalorder %s28, 5
        %s263 = scalar_select %p262, %s28, 5
        %s264 = smul.addr %s263, 4
        %s265 = smul.addr %s261, 24
        %s266 = sadd.s32 %s264, %s265
        %s267 = smul.addr %s266, 8
        %s268 = scalar_lea.vmem %s0, %s267
        %p269 = pneg %p58
        %p270 = pneg %p55
        %p271 = scmp.lt.s32.totalorder %s27, 1
        %s272 = scalar_select %p271, %s27, 1
        %p273 = scmp.lt.s32.totalorder %s28, 5
        %s274 = scalar_select %p273, %s28, 5
        %s275 = smul.addr %s274, 2
        %s276 = smul.addr %s272, 12
        %s277 = sadd.s32 %s275, %s276
        %s278 = smul.addr %s277, 8
        %s279 = scalar_lea.vmem %s1, %s278
        %p280 = pneg %p86
        %p281 = pneg %p83
        %p282 = scmp.lt.s32.totalorder %s28, 5
        %s283 = scalar_select %p282, %s28, 5
        %s284 = smul.addr %s283, 4
        %s285 = smul.addr %s284, 8
        %s286 = scalar_lea.vmem %s2, %s285
        %p287 = pneg %p112
        %p288 = pneg %p109
        %p289 = scmp.lt.s32.totalorder %s28, 5
        %s290 = scalar_select %p289, %s28, 5
        %s291 = smul.addr %s290, 2
        %s292 = smul.addr %s291, 8
        %s293 = scalar_lea.vmem %s3, %s292
        %p294 = pneg %p138
        %p295 = pneg %p135
        %p296 = pneg %p166
        %p297 = pneg %p163
        %s298 = sand.u32 %s153, 1
        %s299 = scalar_lea.sflag [#allocation3], %s298
        %s300 = sand.u32 %s153, 1
        %s301 = scalar_lea.vmem [#allocation2], %s300
        %p302 = pneg %p194
        %p303 = pneg %p191
        %s304 = sand.u32 %s181, 1
        %s305 = scalar_lea.sflag [#allocation5], %s304
        %s306 = sand.u32 %s181, 1
        %s307 = scalar_lea.vmem [#allocation4], %s306
        %p308 = scmp.lt.s32.totalorder %s27, 1
        %s309 = scalar_select %p308, %s27, 1
        %p310 = scmp.lt.s32.totalorder %s28, 5
        %s311 = scalar_select %p310, %s28, 5
        %s312 = smul.addr %s311, 4
        %s313 = smul.addr %s309, 24
        %s314 = sadd.s32 %s312, %s313
        %s315 = smul.addr %s314, 8
        %s316 = scalar_lea.vmem %s0, %s315
        %p317 = scmp.lt.s32.totalorder %s27, 1
        %s318 = scalar_select %p317, %s27, 1
        %p319 = scmp.lt.s32.totalorder %s28, 5
        %s320 = scalar_select %p319, %s28, 5
        %s321 = smul.addr %s320, 2
        %s322 = smul.addr %s318, 12
        %s323 = sadd.s32 %s321, %s322
        %s324 = smul.addr %s323, 8
        %s325 = scalar_lea.vmem %s1, %s324
        %p326 = scmp.lt.s32.totalorder %s28, 5
        %s327 = scalar_select %p326, %s28, 5
        %s328 = smul.addr %s327, 4
        %s329 = smul.addr %s328, 8
        %s330 = scalar_lea.vmem %s2, %s329
        %p331 = scmp.lt.s32.totalorder %s28, 5
        %s332 = scalar_select %p331, %s28, 5
        %s333 = smul.addr %s332, 2
        %s334 = smul.addr %s333, 8
        %s335 = scalar_lea.vmem %s3, %s334
        %v336 = vld [vmem:[%s316] sm:$0xff]
        %v337 = vld [vmem:[%s316 + $0x8] sm:$0xff]
        %v338 = vld [vmem:[%s316 + $0x10] sm:$0xff]
        %v339 = vld [vmem:[%s316 + $0x18] sm:$0xff]
        %v340 = vld [vmem:[%s325] sm:$0xff]
        %v341 = vld [vmem:[%s325 + $0x8] sm:$0x7f]
        %v342 = vld [vmem:[%s330] sm:$0xff]
        %v343 = vld [vmem:[%s330 + $0x8] sm:$0xff]
        %v344 = vld [vmem:[%s330 + $0x10] sm:$0xff]
        %v345 = vld [vmem:[%s330 + $0x18] sm:$0xff]
        %v346 = vld [vmem:[%s335] sm:$0xff]
        %v347 = vld [vmem:[%s335 + $0x8] sm:$0x7f]
        %vm348 = vcmask 261120
        %v350 = vsel %vm348, %v336, 0
        %v353 = vsel %vm348, %v337, 0
        %v356 = vsel %vm348, %v338, 0
        %v359 = vsel %vm348, %v339, 0
        %361 = vmatpush.msra.mxu0 0.0
        %362 = vmatpush.msra.mxu0 0.0
        %363 = vmatpush.msra.mxu0 0.0
        %364 = vmatpush.msra.mxu0 0.0
        %365 = vmatpush.msra.mxu0 0.0
        %366 = vmatpush.msra.mxu0 0.0
        %367 = vmatpush.msra.mxu0 0.0
        %368 = vmatpush.msra.mxu0 0.0
        %369 = vmatpush.msra.mxu0 0.0
        %370 = vmatpush.msra.mxu0 0.0
        %371 = vmatpush.msra.mxu0 0.0
        %372 = vmatpush.msra.mxu0 0.0
        %373 = vmatpush.msra.mxu0 %v345
        %374 = vmatpush.msra.mxu0 %v344
        %375 = vmatpush.msra.mxu0 %v343
        %376 = vmatpush.msra.mxu0 %v342
        %377 = vmatmul.f32.gmra.mxu0 %v350
        %v378 = vpop.f32.mrf.mxu0
        %v379 = vadd.f32 0.0, %v378
        %380 = vmatmul.f32.gmra.mxu0 %v353
        %v381 = vpop.f32.mrf.mxu0
        %v382 = vadd.f32 0.0, %v381
        %383 = vmatmul.f32.gmra.mxu0 %v356
        %v384 = vpop.f32.mrf.mxu0
        %v385 = vadd.f32 0.0, %v384
        %386 = vmatmul.f32.gmra.mxu0 %v359
        %v387 = vpop.f32.mrf.mxu0
        %v388 = vadd.f32 0.0, %v387
        %389 = vdwg.mxu0
        %v391 = vsel %vm348, %v346, 0
        %v394 = vsel %vm348, %v347, 0
        %396 = vmatpush.msra.mxu0 0.0
        %397 = vmatpush.msra.mxu0 0.0
        %398 = vmatpush.msra.mxu0 0.0
        %399 = vmatpush.msra.mxu0 0.0
        %400 = vmatpush.msra.mxu0 0.0
        %401 = vmatpush.msra.mxu0 0.0
        %402 = vmatpush.msra.mxu0 0.0
        %403 = vmatpush.msra.mxu0 0.0
        %404 = vmatpush.msra.mxu0 0.0
        %405 = vmatpush.msra.mxu0 0.0
        %406 = vmatpush.msra.mxu0 0.0
        %407 = vmatpush.msra.mxu0 0.0
        %408 = vmatpush.msra.mxu0 %v388
        %409 = vmatpush.msra.mxu0 %v385
        %410 = vmatpush.msra.mxu0 %v382
        %411 = vmatpush.msra.mxu0 %v379
        %412 = vmatmul.f32.gmra.mxu0 %v391
        %v413 = vpop.f32.mrf.mxu0
        %v414 = vadd.f32 0.0, %v413
        %415 = vmatmul.f32.gmra.mxu0 %v394
        %v416 = vpop.f32.mrf.mxu0
        %v417 = vadd.f32 0.0, %v416
        %418 = vdwg.mxu0
        %v419 = vsub.f32 %v414, %v340
        %v420 = vsub.f32 %v417, %v341
        %v421 = vmul.f32 %v419, %v419
        %v422 = vmul.f32 %v420, %v420
        %vm423 = vcmask 121856
        %v424 = vsel %vm423, %v421, 0.0
        %vm425 = vcmask 120832
        %v426 = vsel %vm425, %v422, 0.0
        %v427 = vadd.f32 %v424, %v426
        %428 = vadd.xlane.f32.xlu0 %v427
        %v429 = vpop.xlane.xlu0 %428
        %v430 = vrot.slane %v429, 4
        %v431 = vadd.f32 %v429, %v430
        %v432 = vrot.slane %v431, 2
        %v433 = vadd.f32 %v431, %v432
        %v434 = vrot.slane %v433, 1
        %v435 = vadd.f32 %v433, %v434
        %s436 = vtos %v435
        %v437 = vstv %s436
        %438 = vst [vmem:[%s301] sm:$0x1] %v437
        %v439 = vsel %vm423, %v340, 0.0
        %v440 = vsel %vm425, %v341, 0.0
        %v441 = vadd.f32 %v439, %v440
        %442 = vadd.xlane.f32.xlu0 %v441
        %v443 = vpop.xlane.xlu0 %442
        %v444 = vrot.slane %v443, 4
        %v445 = vadd.f32 %v443, %v444
        %v446 = vrot.slane %v445, 2
        %v447 = vadd.f32 %v445, %v446
        %v448 = vrot.slane %v447, 1
        %v449 = vadd.f32 %v447, %v448
        %s450 = vtos %v449
        %v451 = vstv %s450
        %452 = vst [vmem:[%s307] sm:$0x1] %v451
        %s453 = sand.u32 %s153, 1
        %s454 = scalar_lea.sflag [#allocation3], %s453
        %s455 = sand.u32 %s153, 1
        %s456 = scalar_lea.vmem [#allocation2], %s455
        %s457 = sand.u32 %s181, 1
        %s458 = scalar_lea.sflag [#allocation5], %s457
        %s459 = sand.u32 %s181, 1
        %s460 = scalar_lea.vmem [#allocation4], %s459
        // Predicated region
        $region37: #{tpu_custom_call.1} parent=35 // pred_check
          %p461 = pneg %p163
        $region38: #{tpu_custom_call.1} parent=35 // pred_check_branch
          %463 = sbr.rel (%p461) target = $region40
        $region39: #{tpu_custom_call.1} parent=35 // pred_region
          %465 = vsyncadd %s454, 0
          %s466 = smul.addr %s27, 6
          %s467 = sadd.s32 %s28, %s466
          %s468 = scalar_lea.hbm %s4, %s467
          %s470 = sshll.u32 %s456, 4
          %s471 = int_to_ptr.vmem [resolvable:$true] %s470
          %s472 = sshll.u32 %s468, 4
          %s473 = int_to_ptr.hbm [resolvable:$true] %s472
          %475 = dma.vmem_to_hbm [thread:$0]  %s471, 16, %s473, %s454
        $region40: #{tpu_custom_call.1} parent=35 // pred_fallthru
          _
        // Predicated region
        $region41: #{tpu_custom_call.1} parent=35 // pred_check
          %p476 = pneg %p191
        $region42: #{tpu_custom_call.1} parent=35 // pred_check_branch
          %478 = sbr.rel (%p476) target = $region44
        $region43: #{tpu_custom_call.1} parent=35 // pred_region
          %480 = vsyncadd %s458, 0
          %s481 = smul.addr %s27, 6
          %s482 = sadd.s32 %s28, %s481
          %s483 = scalar_lea.hbm %s5, %s482
          %s485 = sshll.u32 %s460, 4
          %s486 = int_to_ptr.vmem [resolvable:$true] %s485
          %s487 = sshll.u32 %s483, 4
          %s488 = int_to_ptr.hbm [resolvable:$true] %s487
          %490 = dma.vmem_to_hbm [thread:$0]  %s486, 16, %s488, %s458
        $region44: #{tpu_custom_call.1} parent=35 // pred_fallthru
          _
      $region36: #{tpu_custom_call.1} parent=5 // pred_fallthru
        _
      %p491 = scmp.le.s32.totalorder 2, %s18
      // Predicated region
      $region45: #{tpu_custom_call.1} parent=5 // pred_check
        %p492 = pneg %p491
      $region46: #{tpu_custom_call.1} parent=5 // pred_check_branch
        %494 = sbr.rel (%p492) target = $region48
      $region47: #{tpu_custom_call.1} parent=5 // pred_region
        %s495 = ssub.s32 %s18, 2
        // Predicated region
        $region49: #{tpu_custom_call.1} parent=47 // pred_check
          %p496 = pneg %p169
        $region50: #{tpu_custom_call.1} parent=47 // pred_check_branch
          %498 = sbr.rel (%p496) target = $region52
        $region51: #{tpu_custom_call.1} parent=47 // pred_region
          %s499 = sand.u32 %s154, 1
          %s500 = scalar_lea.sflag [#allocation3], %s499
          %s501 = sand.u32 %s154, 1
          %s502 = scalar_lea.vmem [#allocation2], %s501
          %504 = dma.done %s500, 16
        $region52: #{tpu_custom_call.1} parent=47 // pred_fallthru
          _
        // Predicated region
        $region53: #{tpu_custom_call.1} parent=47 // pred_check
          %p505 = pneg %p197
        $region54: #{tpu_custom_call.1} parent=47 // pred_check_branch
          %507 = sbr.rel (%p505) target = $region56
        $region55: #{tpu_custom_call.1} parent=47 // pred_region
          %s508 = sand.u32 %s182, 1
          %s509 = scalar_lea.sflag [#allocation5], %s508
          %s510 = sand.u32 %s182, 1
          %s511 = scalar_lea.vmem [#allocation4], %s510
          %513 = dma.done %s509, 16
        $region56: #{tpu_custom_call.1} parent=47 // pred_fallthru
          _
      $region48: #{tpu_custom_call.1} parent=5 // pred_fallthru
        _
    $region6: #{tpu_custom_call.1} parent=1 // loop_footer
      %s22 = sadd.s32 1, %s18
    $region7: #{tpu_custom_call.1} parent=1 // loop_footer_branch
      %17 = sbr.rel target = $region3
    $region8: #{tpu_custom_call.1} parent=1 // loop_exit
      _
    %514 = vsyncpa [#allocation3], 1
    %s515 = scalar_lea.sflag [#allocation3], 1
    %516 = vsyncpa %s515, 1
    %517 = vsyncpa [#allocation5], 1
    %s518 = scalar_lea.sflag [#allocation5], 1
    %519 = vsyncpa %s518, 1

</llo_original>
